<compile_context>
chip_gen: v7x
topology: tpu7x:2x2x1
jax: 0.10.0
libtpu: 0.0.40
codegen_flags: <defaults>
</compile_context>

<pallas_src>
import numpy as np
import jax
import jax.numpy as jnp
from jax.experimental import pallas as pl
from jax.experimental.pallas import tpu as pltpu


def _softmax_sublane_kernel(x_ref, o_ref):
    # Block: (1, n, tc).  Reduction axis n lives on sublanes, tc on lanes.
    x = x_ref[...].astype(jnp.float32)
    m = jnp.max(x, axis=1, keepdims=True)
    p = jnp.exp(x - m)                      # single exp per element
    s = jnp.sum(p, axis=1, keepdims=True)
    # Exact divide (keeps sum-to-1 / reference atol tight; see review note).
    o_ref[...] = (p / s).astype(o_ref.dtype)


def _softmax_lane_kernel(x_ref, o_ref):
    # Block: (tr, n).  Reduction axis n lives on lanes (dim == last axis case).
    x = x_ref[...].astype(jnp.float32)
    m = jnp.max(x, axis=-1, keepdims=True)
    p = jnp.exp(x - m)
    s = jnp.sum(p, axis=-1, keepdims=True)
    o_ref[...] = (p / s).astype(o_ref.dtype)


def _vmem_limits():
    """Per-generation VMEM capacity -> (vmem_limit_bytes, per-tile budget)."""
    try:
        cap = int(pltpu.get_tpu_info().vmem_capacity_bytes)
    except Exception:
        cap = 64 * 2**20  # conservative (v7x)
    vmem_limit = int(min(cap * 3 // 4, 96 * 2**20))
    tile_budget = vmem_limit // 2  # headroom for double-buffering bookkeeping
    return vmem_limit, tile_budget


def stable_softmax(x, dim=0):
    """Equivalent of torch.nn.LogSoftmax(dim)(x).exp() (i.e. softmax over `dim`)."""
    shape = x.shape
    ndim = len(shape)
    d = dim % ndim
    n = int(shape[d])
    pre = int(np.prod(shape[:d])) if d > 0 else 1
    post = int(np.prod(shape[d + 1:])) if d < ndim - 1 else 1

    vmem_limit, tile_budget = _vmem_limits()

    # TODO(synk): for very large reduction dims (n so big that even a 128-lane /
    # 8-row tile exceeds the VMEM budget), add an online two-pass path (running
    # max/sum over an 'arbitrary' grid axis) instead of holding all of n in-block.

    if post == 1:
        # dim is the LAST axis: reduce along lanes; (pre, n) is already the
        # contiguous layout, so no transpose is needed.
        x2 = x.reshape(pre, n)
        bytes_per_row = 6 * n * 4          # 2x in + 2x out (double-buffered) + f32 temps
        tr_cap = max(1, tile_budget // bytes_per_row)
        if pre <= tr_cap:
            tr = ((pre + 7) // 8) * 8      # whole thing in one row-tile (pad rows)
        else:
            tr = max(8, (tr_cap // 8) * 8)
        pre_pad = ((pre + tr - 1) // tr) * tr
        # Keep >= 2 grid steps for v7x megacore when cheaply possible.
        if pre_pad // tr < 2 and tr % 16 == 0:
            tr //= 2
        if pre_pad != pre:
            x2 = jnp.pad(x2, ((0, pre_pad - pre), (0, 0)))  # zero rows -> finite softmax, sliced off

        out = pl.pallas_call(
            _softmax_lane_kernel,
            out_shape=jax.ShapeDtypeStruct((pre_pad, n), x.dtype),
            grid=(pre_pad // tr,),
            in_specs=[pl.BlockSpec((tr, n), lambda i: (i, 0))],
            out_specs=pl.BlockSpec((tr, n), lambda i: (i, 0)),
            compiler_params=pltpu.CompilerParams(
                dimension_semantics=("parallel",),
                vmem_limit_bytes=vmem_limit,
            ),
        )(x2)
        if pre_pad != pre:
            out = out[:pre]
        return out.reshape(shape)

    # General case (covers dim == 0 and any middle dim): reshape to the natural
    # contiguous (pre, n, post) layout -- NO transpose -- and reduce over the
    # middle (sublane) axis, with `post` on the lane axis.
    x2 = x.reshape(pre, n, post)

    # Pad the lane axis to a multiple of 128 for unmasked, lane-dense stores.
    post_pad = ((post + 127) // 128) * 128
    if post_pad != post:
        x2 = jnp.pad(x2, ((0, 0), (0, 0), (0, post_pad - post)))

    # VMEM-budgeted lane-tile: ~ 2x in + 2x out (double-buffered) + f32 temps.
    bytes_per_col = 6 * n * 4
    tc_cap = (tile_budget // max(bytes_per_col, 1)) // 128 * 128
    divisors = [t for t in range(128, post_pad + 1, 128) if post_pad % t == 0]
    fits = [t for t in divisors if t <= tc_cap] or [128]
    tc = fits[-1]
    # Keep >= 2 grid steps so v7x can shard across both TensorCores.
    if pre * (post_pad // tc) < 2 and len(fits) > 1:
        tc = fits[-2]

    out = pl.pallas_call(
        _softmax_sublane_kernel,
        out_shape=jax.ShapeDtypeStruct((pre, n, post_pad), x.dtype),
        grid=(pre, post_pad // tc),
        in_specs=[pl.BlockSpec((1, n, tc), lambda i, j: (i, 0, j))],
        out_specs=pl.BlockSpec((1, n, tc), lambda i, j: (i, 0, j)),
        compiler_params=pltpu.CompilerParams(
            dimension_semantics=("parallel", "parallel"),
            vmem_limit_bytes=vmem_limit,
        ),
    )(x2)
    if post_pad != post:
        out = out[:, :, :post]
    return out.reshape(shape)


if __name__ == "__main__":
    key = jax.random.PRNGKey(0)
    # Small input consistent with the module: (seq=8, hidden=32), softmax over dim=0.
    x = jax.random.normal(key, (8, 32), dtype=jnp.float32) * 5.0

    y = stable_softmax(x, dim=0)
    y = jax.block_until_ready(y)

    # Reference check: log_softmax(x).exp() == softmax(x).
    ref = jax.nn.softmax(x, axis=0)
    np.testing.assert_allclose(np.asarray(y), np.asarray(ref), rtol=1e-5, atol=1e-6)
    np.testing.assert_allclose(np.asarray(y).sum(axis=0), np.ones((32,)), rtol=1e-5, atol=1e-5)

    # Also exercise the transpose-free last-dim (lane-reduction) path.
    x2 = jax.random.normal(jax.random.PRNGKey(1), (8, 32), dtype=jnp.float32) * 5.0
    y2 = jax.block_until_ready(stable_softmax(x2, dim=-1))
    np.testing.assert_allclose(
        np.asarray(y2), np.asarray(jax.nn.softmax(x2, axis=-1)), rtol=1e-5, atol=1e-6
    )

    print("KERNEL_OK")
</pallas_src>

<mosaic_0001>
module attributes {stable_mosaic.version = 11 : i64} {
  func.func @_softmax_sublane_kernel(%arg0: i32, %arg1: i32, %arg2: memref<1x8x128xf32, #tpu.memory_space<vmem>>, %arg3: memref<1x8x128xf32, #tpu.memory_space<vmem>>) attributes {dimension_semantics = [#tpu.dimension_semantics<parallel>, #tpu.dimension_semantics<parallel>], iteration_bounds = array<i64: 1, 1>, scalar_prefetch = 0 : i64, scratch_operands = 0 : i64, tpu.core_type = #tpu.core_type<tc>, window_params = [{transform_indices = @transform_0, window_bounds = array<i64: 1, 8, 128>}, {transform_indices = @transform_1, window_bounds = array<i64: 1, 8, 128>}]} {
    %c0 = arith.constant 0 : index
    %c0_0 = arith.constant 0 : index
    %c0_1 = arith.constant 0 : index
    %0 = vector.load %arg2[%c0, %c0_0, %c0_1] : memref<1x8x128xf32, #tpu.memory_space<vmem>>, vector<1x8x128xf32>
    %cst = arith.constant dense<0xFF800000> : vector<1x128xf32>
    %1 = vector.multi_reduction <maximumf>, %0, %cst [1] : vector<1x8x128xf32> to vector<1x128xf32>
    %2 = vector.shape_cast %1 : vector<1x128xf32> to vector<1x1x128xf32>
    %3 = vector.broadcast %2 : vector<1x1x128xf32> to vector<1x8x128xf32>
    %4 = arith.subf %0, %3 : vector<1x8x128xf32>
    %5 = math.exp %4 : vector<1x8x128xf32>
    %cst_2 = arith.constant dense<0.000000e+00> : vector<1x128xf32>
    %6 = vector.multi_reduction <add>, %5, %cst_2 [1] : vector<1x8x128xf32> to vector<1x128xf32>
    %7 = vector.shape_cast %6 : vector<1x128xf32> to vector<1x1x128xf32>
    %8 = vector.broadcast %7 : vector<1x1x128xf32> to vector<1x8x128xf32>
    %9 = arith.divf %5, %8 : vector<1x8x128xf32>
    %c0_3 = arith.constant 0 : index
    %c0_4 = arith.constant 0 : index
    %c0_5 = arith.constant 0 : index
    %10 = vector.load %arg3[%c0_3, %c0_4, %c0_5] : memref<1x8x128xf32, #tpu.memory_space<vmem>>, vector<1x8x128xf32>
    tpu.vector_store %arg3[%c0_3, %c0_4, %c0_5], %9 {strides = array<i32>} : memref<1x8x128xf32, #tpu.memory_space<vmem>>, vector<1x8x128xf32>,
    return
  }
  func.func @transform_0(%arg0: i32, %arg1: i32) -> (i32, i32, i32) {
    %c0_i32 = arith.constant 0 : i32
    %c0_i32_0 = arith.constant 0 : i32
    return %arg0, %c0_i32, %arg1 : i32, i32, i32
  }
  func.func @transform_1(%arg0: i32, %arg1: i32) -> (i32, i32, i32) {
    %c0_i32 = arith.constant 0 : i32
    %c0_i32_0 = arith.constant 0 : i32
    return %arg0, %c0_i32, %arg1 : i32, i32, i32
  }
}

</mosaic_0001>

<llo_original>
// kernel: tpu_custom_call.1
$region0: #{tpu_custom_call.1}
  #allocation0 [shape = 'u32[]', space=smem, size = 0x4, offset = 0x4, fixed_abs, tag = 'smem constant byte address 0x4 - core index']
  #allocation1 [shape = 'u32[144,128]{1,0:T(1,128)}', space=vmem, size = 0x12000, scoped, tag = 'internal scratch']
  %s0 = inlined_call_operand.hbm [shape: f32[1,8,128], index: 0, kind: input, shape index: {}]
  %s1 = inlined_call_operand.hbm [shape: f32[1,8,128], index: 1, kind: output, shape index: {}]
  %s2 = sld [smem:[#allocation0]]
  $region18: #{tpu_custom_call.1} parent=0
    _
  %s4 = ssub.s32 1, %s2
  %s5 = scalar_select 0, %s4, %s2
  $region1: #{tpu_custom_call.1} parent=0
    #allocation2 [shape = 'u8[4096]{0}', space=vmem, size = 0x1000, scoped, tag = 'input window, operand 0, single buffered']
    #allocation3 [shape = 's32[1]{0}', space=sflag, size = 0x4, scoped, tag = 'scoped memory for tpu_custom_call.1']
    #allocation4 [shape = 's32[1]{0}', space=sflag, size = 0x4, scoped, tag = 'scoped memory for tpu_custom_call.1']
    #allocation5 [shape = 'u8[4096]{0}', space=vmem, size = 0x1000, scoped, tag = 'output window, operand 0, single buffered']
    %6 = vsyncpa [#allocation3], 0
    %7 = vsyncpa [#allocation4], 0
    // Predicated region
    $region2: #{tpu_custom_call.1} parent=1 // pred_check
      _
    $region3: #{tpu_custom_call.1} parent=1 // pred_check_branch
      %9 = sbr.rel (0) target = $region5
    $region4: #{tpu_custom_call.1} parent=1 // pred_region
      %s11 = ssub.s32 128, 128
      %12 = vsyncadd [#allocation3], %s11
      %s14 = sshll.u32 [#allocation2], 4
      %s15 = int_to_ptr.vmem [resolvable:$true] %s14
      %17 = dma.hbm_to_vmem [thread:$0]  %s0, 128, %s15, [#allocation3]
    $region5: #{tpu_custom_call.1} parent=1 // pred_fallthru
      _
    // Predicated region
    $region6: #{tpu_custom_call.1} parent=1 // pred_check
      _
    $region7: #{tpu_custom_call.1} parent=1 // pred_check_branch
      %19 = sbr.rel (0) target = $region9
    $region8: #{tpu_custom_call.1} parent=1 // pred_region
      %20 = dma.done [#allocation3], 128
    $region9: #{tpu_custom_call.1} parent=1 // pred_fallthru
      _
    %v21 = vld [vmem:[#allocation2] sm:$0xff]
    %v22 = vrot.slane %v21, 4
    %v23 = vmax.f32 %v21, %v22
    %v24 = vrot.slane %v23, 2
    %v25 = vmax.f32 %v23, %v24
    %v26 = vrot.slane %v25, 1
    %v27 = vmax.f32 %v25, %v26
    %v28 = vsub.f32 %v21, %v27
    %v29 = vmul.f32 %v28, 1.442695
    %v30 = vpow.pop %v29
    %v31 = vrot.slane %v30, 4
    %v32 = vadd.f32 %v30, %v31
    %v33 = vrot.slane %v32, 2
    %v34 = vadd.f32 %v32, %v33
    %v35 = vrot.slane %v34, 1
    %v36 = vadd.f32 %v34, %v35
    %v37 = vrcp.pop %v36
    %v38 = vmul.f32 %v30, %v37
    %39 = vst [vmem:[#allocation5] sm:$0xff] %v38
    // Predicated region
    $region10: #{tpu_custom_call.1} parent=1 // pred_check
      _
    $region11: #{tpu_custom_call.1} parent=1 // pred_check_branch
      %41 = sbr.rel (0) target = $region13
    $region12: #{tpu_custom_call.1} parent=1 // pred_region
      %s43 = ssub.s32 128, 128
      %44 = vsyncadd [#allocation4], %s43
      %s46 = sshll.u32 [#allocation5], 4
      %s47 = int_to_ptr.vmem [resolvable:$true] %s46
      %49 = dma.vmem_to_hbm [thread:$0]  %s47, 128, %s1, [#allocation4]
    $region13: #{tpu_custom_call.1} parent=1 // pred_fallthru
      _
    // Predicated region
    $region14: #{tpu_custom_call.1} parent=1 // pred_check
      _
    $region15: #{tpu_custom_call.1} parent=1 // pred_check_branch
      %51 = sbr.rel (0) target = $region17
    $region16: #{tpu_custom_call.1} parent=1 // pred_region
      %52 = dma.done [#allocation4], 128
    $region17: #{tpu_custom_call.1} parent=1 // pred_fallthru
      _
    %53 = vsyncpa [#allocation3], 1
    %54 = vsyncpa [#allocation4], 1

</llo_original>
